<compile_context>
chip_gen: v7x
topology: tpu7x:2x2x1
jax: 0.10.0
libtpu: 0.0.40
codegen_flags: <defaults>
</compile_context>

<pallas_src>
import functools

import jax
import jax.numpy as jnp
from jax.experimental import pallas as pl
from jax.experimental.pallas import tpu as pltpu


# ----------------------------------------------------------------------------
# Kernel: one Branch_Cell forward, both axes folded into lanes, no grid.
#   H = naxis * hidden   (branch-state slab width)
#   A = naxis * ahidden  (db-state / output slab width)
# ----------------------------------------------------------------------------
def _branch_cell_kernel(x_ref, hx_ref, cx_ref, hdb_ref,
                        w1x_ref, w1h_ref, w2_ref, w2d_ref, w3_ref, bb_ref,
                        out_ref, *, H, A):
    f32 = jnp.float32
    h_x = hx_ref[...]                          # (seq, H)  lane-packed per axis
    c_x = cx_ref[...]                          # (seq, H)

    # ---- stage 1: branch (LSTM-like) gates ---------------------------------
    # column order of the 4H-wide gate slab: [f | g(tanh) | i | o]
    gx = jnp.dot(x_ref[...], w1x_ref[...], preferred_element_type=f32)   # (seq, 4H)
    gh = jnp.dot(h_x, w1h_ref[...], preferred_element_type=f32)          # (seq, 4H)

    a_f = gx[:, 0:H]                           # x   @ W_if   (per axis)
    h_f = gh[:, 0:H]                           # h_x @ W_hf   (per axis)
    # diff_percent(a_f, h_f) = 1 - |(a_f - h_f) / a_f|  (exact divide, as in ref)
    fg_p = 1.0 - jnp.abs((a_f - h_f) / a_f)

    s = gx[:, H:4 * H] + gh[:, H:4 * H]        # [g | i | o] summed once
    gg = jnp.tanh(s[:, 0:H])
    io = jax.nn.sigmoid(s[:, H:3 * H])         # one 2H-lane EUP pass for i and o
    ig, og = io[:, 0:H], io[:, H:2 * H]

    c_t1 = fg_p * c_x + ig * gg                # (seq, H)
    h_t1 = og * jnp.tanh(c_t1)                 # (seq, H)

    # ---- stage 2: DB gates --------------------------------------------------
    # w2 column order (rows = H): [in_db | fn_db | cn_db | c_db(W_ict)]
    g2 = (jnp.dot(h_t1, w2_ref[:, 0:3 * A], preferred_element_type=f32)
          + jnp.dot(hdb_ref[...], w2d_ref[...], preferred_element_type=f32)
          + bb_ref[:, 0:3 * A])                # (seq, 3A)
    sg = jax.nn.sigmoid(g2[:, 0:2 * A])        # one 2A-lane EUP pass (in_db, fn_db)
    in_db, fn_db = sg[:, 0:A], sg[:, A:2 * A]
    cn_db = jnp.tanh(g2[:, 2 * A:3 * A])
    c_db = jnp.dot(c_t1, w2_ref[:, 3 * A:4 * A], preferred_element_type=f32)  # (seq, A)

    i_cell = in_db * c_db
    c_cell = fn_db * cn_db + i_cell

    # ---- stage 3: output projections ---------------------------------------
    t_1 = (jnp.dot(i_cell, w3_ref[:, 0:A], preferred_element_type=f32)
           + bb_ref[:, 3 * A:4 * A])
    t_2 = (jnp.dot(c_cell, w3_ref[:, A:2 * A], preferred_element_type=f32)
           + bb_ref[:, 4 * A:5 * A])

    # single lane-dense store: (seq, A) = (seq, naxis * ahidden)
    out_ref[...] = jax.nn.sigmoid(t_2) * jnp.tanh(t_1)


# ----------------------------------------------------------------------------
# Host-side weight packing (done ONCE at parameter-load time).
# ----------------------------------------------------------------------------
def _lane_pack(w):
    # (naxis, r, c) -> (r, naxis*c); axis i occupies columns [i*c:(i+1)*c]
    n, r, c = w.shape
    return jnp.transpose(w, (1, 0, 2)).reshape(r, n * c)


def _block_diag(w):
    # (naxis, r, c) -> (naxis*r, naxis*c), block-diagonal over axes
    n, r, c = w.shape
    out = jnp.zeros((n * r, n * c), w.dtype)
    for i in range(n):
        out = out.at[i * r:(i + 1) * r, i * c:(i + 1) * c].set(w[i])
    return out


def pack_params(p):
    # stage-1 gate column order: [f | g | i | o]
    w1x = jnp.concatenate([_lane_pack(p["W_if"]), _lane_pack(p["W_ig"]),
                           _lane_pack(p["W_ii"]), _lane_pack(p["W_io"])], axis=-1)
    w1h = jnp.concatenate([_block_diag(p["W_hf"]), _block_diag(p["W_hg"]),
                           _block_diag(p["W_hi"]), _block_diag(p["W_ho"])], axis=-1)
    # stage-2 weights with H rows: [in_db | fn_db | cn_db | c_db(W_ict)]
    w2 = jnp.concatenate([_block_diag(p["W_idb"]), _block_diag(p["W_idbf"]),
                          _block_diag(p["W_idbc"]), _block_diag(p["W_ict"])], axis=-1)
    # stage-2 weights with ahidden rows (shared h_db operand): [in | fn | cn]
    w2d = jnp.concatenate([_lane_pack(p["W_hdb"]), _lane_pack(p["W_hdbf"]),
                           _lane_pack(p["W_hdbc"])], axis=-1)
    # stage-3: [t_1 (from i_cell) | t_2 (from c_cell)]
    w3 = jnp.concatenate([_block_diag(p["W_ilc"]), _block_diag(p["W_ilh"])], axis=-1)
    # biases: [b2 (3A, pair-summed) | b_ilc (A) | b_ilh (A)]
    bb = jnp.concatenate([_lane_pack(p["b_idb"] + p["b_hdb"]),
                          _lane_pack(p["b_idbf"] + p["b_hdbf"]),
                          _lane_pack(p["b_idbc"] + p["b_hdbc"]),
                          _lane_pack(p["b_ilc"]), _lane_pack(p["b_ilh"])], axis=-1)
    return {"w1x": w1x, "w1h": w1h, "w2": w2, "w2d": w2d, "w3": w3, "bb": bb}


# ----------------------------------------------------------------------------
# Jitted forward: zero initial branch/db state, call the kernel per layer,
# reshape to (naxis, seq, ahidden) inside the same jit.
# ----------------------------------------------------------------------------
def _branch_cell_call(x, h_x, c_x, h_db, pk, H, A):
    seq = x.shape[0]
    kernel = functools.partial(_branch_cell_kernel, H=H, A=A)
    vmem = pl.BlockSpec(memory_space=pltpu.MemorySpace.VMEM)
    return pl.pallas_call(
        kernel,
        out_shape=jax.ShapeDtypeStruct((seq, A), jnp.float32),
        in_specs=[vmem] * 10,
        out_specs=vmem,
    )(x, h_x, c_x, h_db,
      pk["w1x"], pk["w1h"], pk["w2"], pk["w2d"], pk["w3"], pk["bb"])


@jax.jit
def v2_forward(x, packed_layers):
    """V_2.forward with pre-packed weights (list of per-layer packed dicts)."""
    seq = x.shape[0]
    out = None
    naxis = ahidden = None
    for pk in packed_layers:
        ahidden = pk["w2d"].shape[0]
        A = pk["w3"].shape[0]
        naxis = A // ahidden
        H = pk["w1h"].shape[0]
        # The module always zero-initialises the per-layer branch state.
        h_x = jnp.zeros((seq, H), jnp.float32)
        c_x = jnp.zeros((seq, H), jnp.float32)
        h_db = jnp.zeros((seq, ahidden), jnp.float32) if out is None else out
        out = _branch_cell_call(x, h_x, c_x, h_db, pk, H, A)
        # TODO(synk): the reference PyTorch crashes for layers > 1 (3-D h_db is
        # fed back where a (seq, ahidden) db_state is expected); only
        # layers == 1 is reproducible, so only that path is exercised.
    return out.reshape(seq, naxis, ahidden).transpose(1, 0, 2)


# ----------------------------------------------------------------------------
# Parameter init (mirrors the PyTorch module's xavier/zeros init).
# ----------------------------------------------------------------------------
def init_params(key, input_size, hidden_size, ahidden_size, naxis, layers):
    def xavier(k, shape):
        fan_in, fan_out = shape[-2], shape[-1]
        limit = (6.0 / (fan_in + fan_out)) ** 0.5
        return jax.random.uniform(k, shape, jnp.float32, -limit, limit)

    params = []
    layer_keys = jax.random.split(key, layers)
    for l in range(layers):
        k = jax.random.split(layer_keys[l], 17)
        zeros_b = lambda: jnp.zeros((naxis, 1, ahidden_size), jnp.float32)
        p = {
            "W_ii": xavier(k[0], (naxis, input_size, hidden_size)),
            "W_hi": xavier(k[1], (naxis, hidden_size, hidden_size)),
            "W_if": xavier(k[2], (naxis, input_size, hidden_size)),
            "W_hf": xavier(k[3], (naxis, hidden_size, hidden_size)),
            "W_ig": xavier(k[4], (naxis, input_size, hidden_size)),
            "W_hg": xavier(k[5], (naxis, hidden_size, hidden_size)),
            "W_io": xavier(k[6], (naxis, input_size, hidden_size)),
            "W_ho": xavier(k[7], (naxis, hidden_size, hidden_size)),
            "W_idb": xavier(k[8], (naxis, hidden_size, ahidden_size)),
            "W_hdb": xavier(k[9], (naxis, ahidden_size, ahidden_size)),
            "W_idbf": xavier(k[10], (naxis, hidden_size, ahidden_size)),
            "W_hdbf": xavier(k[11], (naxis, ahidden_size, ahidden_size)),
            "W_idbc": xavier(k[12], (naxis, hidden_size, ahidden_size)),
            "W_hdbc": xavier(k[13], (naxis, ahidden_size, ahidden_size)),
            "W_ilc": xavier(k[14], (naxis, ahidden_size, ahidden_size)),
            "W_ilh": xavier(k[15], (naxis, ahidden_size, ahidden_size)),
            "W_ict": xavier(k[16], (naxis, hidden_size, ahidden_size)),
            # 1-D parameters are zero-initialised in the PyTorch module
            "b_idb": zeros_b(), "b_hdb": zeros_b(),
            "b_idbf": zeros_b(), "b_hdbf": zeros_b(),
            "b_idbc": zeros_b(), "b_hdbc": zeros_b(),
            "b_ilc": zeros_b(), "b_ilh": zeros_b(),
        }
        params.append(p)
    return params


# ----------------------------------------------------------------------------
# Plain-JAX reference (unfused, exact math) for the correctness check.
# ----------------------------------------------------------------------------
def reference_forward(x, h_x, c_x, h_db, p):
    sig = lambda v: 1.0 / (1.0 + jnp.exp(-v))
    mm = lambda a, b: jnp.dot(a, b, precision=jax.lax.Precision.HIGHEST)
    naxis = p["W_ii"].shape[0]
    outs = []
    for i in range(naxis):
        hx, cx = h_x[i], c_x[i]
        a_f, h_f = mm(x, p["W_if"][i]), mm(hx, p["W_hf"][i])
        fg_p = 1.0 - jnp.abs((a_f - h_f) / a_f)
        ig_p = sig(mm(x, p["W_ii"][i]) + mm(hx, p["W_hi"][i]))
        gg_t = jnp.tanh(mm(x, p["W_ig"][i]) + mm(hx, p["W_hg"][i]))
        og_t = sig(mm(x, p["W_io"][i]) + mm(hx, p["W_ho"][i]))
        c_t1 = fg_p * cx + ig_p * gg_t
        h_t1 = og_t * jnp.tanh(c_t1)
        c_db = mm(c_t1, p["W_ict"][i])
        in_db = sig(mm(h_t1, p["W_idb"][i]) + mm(h_db, p["W_hdb"][i])
                    + p["b_idb"][i] + p["b_hdb"][i])
        fn_db = sig(mm(h_t1, p["W_idbf"][i]) + mm(h_db, p["W_hdbf"][i])
                    + p["b_idbf"][i] + p["b_hdbf"][i])
        cn_db = jnp.tanh(mm(h_t1, p["W_idbc"][i]) + mm(h_db, p["W_hdbc"][i])
                         + p["b_idbc"][i] + p["b_hdbc"][i])
        i_cell = in_db * c_db
        c_cell = fn_db * cn_db + i_cell
        t_1 = mm(i_cell, p["W_ilc"][i]) + p["b_ilc"][i]
        t_2 = mm(c_cell, p["W_ilh"][i]) + p["b_ilh"][i]
        outs.append(sig(t_2) * jnp.tanh(t_1))
    return jnp.stack(outs, axis=0)


if __name__ == "__main__":
    SEQ, INPUT, HIDDEN, AHIDDEN, NAXIS, LAYERS = 8, 16, 32, 32, 2, 1

    key = jax.random.PRNGKey(0)
    kx, kp = jax.random.split(key)
    x = jax.random.normal(kx, (SEQ, INPUT), jnp.float32)
    params = init_params(kp, INPUT, HIDDEN, AHIDDEN, NAXIS, LAYERS)

    # Pack weights ONCE at parameter-load time and reuse across calls.
    packed = [pack_params(p) for p in params]

    out = v2_forward(x, packed)
    out = jax.block_until_ready(out)
    # second call reuses the cached jit + packed weights (no host repacking)
    out = jax.block_until_ready(v2_forward(x, packed))

    # sanity check against the plain-JAX reference
    h_x0 = jnp.zeros((NAXIS, SEQ, HIDDEN), jnp.float32)
    c_x0 = jnp.zeros((NAXIS, SEQ, HIDDEN), jnp.float32)
    h_db0 = jnp.zeros((SEQ, AHIDDEN), jnp.float32)
    ref = reference_forward(x, h_x0, c_x0, h_db0, params[0])

    assert out.shape == (NAXIS, SEQ, AHIDDEN)
    assert bool(jnp.allclose(out, ref, atol=2e-2, rtol=2e-2))
    print("KERNEL_OK")
</pallas_src>

<mosaic_0001>
module attributes {stable_mosaic.version = 11 : i64} {
  func.func @_branch_cell_kernel(%arg0: memref<8x16xf32, #tpu.memory_space<vmem>>, %arg1: memref<8x64xf32, #tpu.memory_space<vmem>>, %arg2: memref<8x64xf32, #tpu.memory_space<vmem>>, %arg3: memref<8x32xf32, #tpu.memory_space<vmem>>, %arg4: memref<16x256xf32, #tpu.memory_space<vmem>>, %arg5: memref<64x256xf32, #tpu.memory_space<vmem>>, %arg6: memref<64x256xf32, #tpu.memory_space<vmem>>, %arg7: memref<32x192xf32, #tpu.memory_space<vmem>>, %arg8: memref<64x128xf32, #tpu.memory_space<vmem>>, %arg9: memref<1x320xf32, #tpu.memory_space<vmem>>, %arg10: memref<8x64xf32, #tpu.memory_space<vmem>>) attributes {dimension_semantics = [], scalar_prefetch = 0 : i64, scratch_operands = 0 : i64, tpu.core_type = #tpu.core_type<tc>} {
    %c0 = arith.constant 0 : index
    %c0_0 = arith.constant 0 : index
    %0 = vector.load %arg1[%c0, %c0_0] : memref<8x64xf32, #tpu.memory_space<vmem>>, vector<8x64xf32>
    %c0_1 = arith.constant 0 : index
    %c0_2 = arith.constant 0 : index
    %1 = vector.load %arg2[%c0_1, %c0_2] : memref<8x64xf32, #tpu.memory_space<vmem>>, vector<8x64xf32>
    %c0_3 = arith.constant 0 : index
    %c0_4 = arith.constant 0 : index
    %2 = vector.load %arg0[%c0_3, %c0_4] : memref<8x16xf32, #tpu.memory_space<vmem>>, vector<8x16xf32>
    %c0_5 = arith.constant 0 : index
    %c0_6 = arith.constant 0 : index
    %3 = vector.load %arg4[%c0_5, %c0_6] : memref<16x256xf32, #tpu.memory_space<vmem>>, vector<16x256xf32>
    %cst = arith.constant dense<0.000000e+00> : vector<8x256xf32>
    %4 = tpu.matmul %2, %3, %cst {dimension_numbers = #tpu.dot_dimension_numbers<[1], [0], [0], [1], [0, 0, 1, 1], [], []>} : vector<8x16xf32>, vector<16x256xf32>, vector<8x256xf32> -> vector<8x256xf32>
    %c0_7 = arith.constant 0 : index
    %c0_8 = arith.constant 0 : index
    %5 = vector.load %arg5[%c0_7, %c0_8] : memref<64x256xf32, #tpu.memory_space<vmem>>, vector<64x256xf32>
    %cst_9 = arith.constant dense<0.000000e+00> : vector<8x256xf32>
    %6 = tpu.matmul %0, %5, %cst_9 {dimension_numbers = #tpu.dot_dimension_numbers<[1], [0], [0], [1], [0, 0, 1, 1], [], []>} : vector<8x64xf32>, vector<64x256xf32>, vector<8x256xf32> -> vector<8x256xf32>
    %7 = vector.extract_strided_slice %4 {offsets = [0, 0], sizes = [8, 64], strides = [1, 1]} : vector<8x256xf32> to vector<8x64xf32>
    %8 = vector.extract_strided_slice %6 {offsets = [0, 0], sizes = [8, 64], strides = [1, 1]} : vector<8x256xf32> to vector<8x64xf32>
    %9 = arith.subf %7, %8 : vector<8x64xf32>
    %10 = arith.divf %9, %7 : vector<8x64xf32>
    %11 = math.absf %10 : vector<8x64xf32>
    %cst_10 = arith.constant 1.000000e+00 : f32
    %12 = vector.broadcast %cst_10 : f32 to vector<8x64xf32>
    %13 = arith.subf %12, %11 : vector<8x64xf32>
    %14 = vector.extract_strided_slice %4 {offsets = [0, 64], sizes = [8, 192], strides = [1, 1]} : vector<8x256xf32> to vector<8x192xf32>
    %15 = vector.extract_strided_slice %6 {offsets = [0, 64], sizes = [8, 192], strides = [1, 1]} : vector<8x256xf32> to vector<8x192xf32>
    %16 = arith.addf %14, %15 : vector<8x192xf32>
    %17 = vector.extract_strided_slice %16 {offsets = [0, 0], sizes = [8, 64], strides = [1, 1]} : vector<8x192xf32> to vector<8x64xf32>
    %18 = math.tanh %17 : vector<8x64xf32>
    %19 = vector.extract_strided_slice %16 {offsets = [0, 64], sizes = [8, 128], strides = [1, 1]} : vector<8x192xf32> to vector<8x128xf32>
    %20 = arith.negf %19 : vector<8x128xf32>
    %21 = math.exp %20 : vector<8x128xf32>
    %cst_11 = arith.constant 1.000000e+00 : f32
    %22 = vector.broadcast %cst_11 : f32 to vector<8x128xf32>
    %23 = arith.addf %22, %21 : vector<8x128xf32>
    %24 = arith.divf %22, %23 : vector<8x128xf32>
    %25 = vector.extract_strided_slice %24 {offsets = [0, 0], sizes = [8, 64], strides = [1, 1]} : vector<8x128xf32> to vector<8x64xf32>
    %26 = vector.extract_strided_slice %24 {offsets = [0, 64], sizes = [8, 64], strides = [1, 1]} : vector<8x128xf32> to vector<8x64xf32>
    %27 = arith.mulf %13, %1 : vector<8x64xf32>
    %28 = arith.mulf %25, %18 : vector<8x64xf32>
    %29 = arith.addf %27, %28 : vector<8x64xf32>
    %30 = math.tanh %29 : vector<8x64xf32>
    %31 = arith.mulf %26, %30 : vector<8x64xf32>
    %c0_12 = arith.constant 0 : index
    %c0_13 = arith.constant 0 : index
    %32 = vector.load %arg6[%c0_12, %c0_13] : memref<64x256xf32, #tpu.memory_space<vmem>>, vector<64x192xf32>
    %cst_14 = arith.constant dense<0.000000e+00> : vector<8x192xf32>
    %33 = tpu.matmul %31, %32, %cst_14 {dimension_numbers = #tpu.dot_dimension_numbers<[1], [0], [0], [1], [0, 0, 1, 1], [], []>} : vector<8x64xf32>, vector<64x192xf32>, vector<8x192xf32> -> vector<8x192xf32>
    %c0_15 = arith.constant 0 : index
    %c0_16 = arith.constant 0 : index
    %34 = vector.load %arg3[%c0_15, %c0_16] : memref<8x32xf32, #tpu.memory_space<vmem>>, vector<8x32xf32>
    %c0_17 = arith.constant 0 : index
    %c0_18 = arith.constant 0 : index
    %35 = vector.load %arg7[%c0_17, %c0_18] : memref<32x192xf32, #tpu.memory_space<vmem>>, vector<32x192xf32>
    %cst_19 = arith.constant dense<0.000000e+00> : vector<8x192xf32>
    %36 = tpu.matmul %34, %35, %cst_19 {dimension_numbers = #tpu.dot_dimension_numbers<[1], [0], [0], [1], [0, 0, 1, 1], [], []>} : vector<8x32xf32>, vector<32x192xf32>, vector<8x192xf32> -> vector<8x192xf32>
    %37 = arith.addf %33, %36 : vector<8x192xf32>
    %c0_20 = arith.constant 0 : index
    %c0_21 = arith.constant 0 : index
    %38 = vector.load %arg9[%c0_20, %c0_21] : memref<1x320xf32, #tpu.memory_space<vmem>>, vector<1x192xf32>
    %39 = vector.broadcast %38 : vector<1x192xf32> to vector<8x192xf32>
    %40 = arith.addf %37, %39 : vector<8x192xf32>
    %41 = vector.extract_strided_slice %40 {offsets = [0, 0], sizes = [8, 128], strides = [1, 1]} : vector<8x192xf32> to vector<8x128xf32>
    %42 = arith.negf %41 : vector<8x128xf32>
    %43 = math.exp %42 : vector<8x128xf32>
    %cst_22 = arith.constant 1.000000e+00 : f32
    %44 = vector.broadcast %cst_22 : f32 to vector<8x128xf32>
    %45 = arith.addf %44, %43 : vector<8x128xf32>
    %46 = arith.divf %44, %45 : vector<8x128xf32>
    %47 = vector.extract_strided_slice %46 {offsets = [0, 0], sizes = [8, 64], strides = [1, 1]} : vector<8x128xf32> to vector<8x64xf32>
    %48 = vector.extract_strided_slice %46 {offsets = [0, 64], sizes = [8, 64], strides = [1, 1]} : vector<8x128xf32> to vector<8x64xf32>
    %49 = vector.extract_strided_slice %40 {offsets = [0, 128], sizes = [8, 64], strides = [1, 1]} : vector<8x192xf32> to vector<8x64xf32>
    %50 = math.tanh %49 : vector<8x64xf32>
    %c0_23 = arith.constant 0 : index
    %c192 = arith.constant 192 : index
    %51 = vector.load %arg6[%c0_23, %c192] : memref<64x256xf32, #tpu.memory_space<vmem>>, vector<64x64xf32>
    %cst_24 = arith.constant dense<0.000000e+00> : vector<8x64xf32>
    %52 = tpu.matmul %29, %51, %cst_24 {dimension_numbers = #tpu.dot_dimension_numbers<[1], [0], [0], [1], [0, 0, 1, 1], [], []>} : vector<8x64xf32>, vector<64x64xf32>, vector<8x64xf32> -> vector<8x64xf32>
    %53 = arith.mulf %47, %52 : vector<8x64xf32>
    %54 = arith.mulf %48, %50 : vector<8x64xf32>
    %55 = arith.addf %54, %53 : vector<8x64xf32>
    %c0_25 = arith.constant 0 : index
    %c0_26 = arith.constant 0 : index
    %56 = vector.load %arg8[%c0_25, %c0_26] : memref<64x128xf32, #tpu.memory_space<vmem>>, vector<64x64xf32>
    %cst_27 = arith.constant dense<0.000000e+00> : vector<8x64xf32>
    %57 = tpu.matmul %53, %56, %cst_27 {dimension_numbers = #tpu.dot_dimension_numbers<[1], [0], [0], [1], [0, 0, 1, 1], [], []>} : vector<8x64xf32>, vector<64x64xf32>, vector<8x64xf32> -> vector<8x64xf32>
    %c0_28 = arith.constant 0 : index
    %c192_29 = arith.constant 192 : index
    %58 = vector.load %arg9[%c0_28, %c192_29] : memref<1x320xf32, #tpu.memory_space<vmem>>, vector<1x64xf32>
    %59 = vector.broadcast %58 : vector<1x64xf32> to vector<8x64xf32>
    %60 = arith.addf %57, %59 : vector<8x64xf32>
    %c0_30 = arith.constant 0 : index
    %c64 = arith.constant 64 : index
    %61 = vector.load %arg8[%c0_30, %c64] : memref<64x128xf32, #tpu.memory_space<vmem>>, vector<64x64xf32>
    %cst_31 = arith.constant dense<0.000000e+00> : vector<8x64xf32>
    %62 = tpu.matmul %55, %61, %cst_31 {dimension_numbers = #tpu.dot_dimension_numbers<[1], [0], [0], [1], [0, 0, 1, 1], [], []>} : vector<8x64xf32>, vector<64x64xf32>, vector<8x64xf32> -> vector<8x64xf32>
    %c0_32 = arith.constant 0 : index
    %c256 = arith.constant 256 : index
    %63 = vector.load %arg9[%c0_32, %c256] : memref<1x320xf32, #tpu.memory_space<vmem>>, vector<1x64xf32>
    %64 = vector.broadcast %63 : vector<1x64xf32> to vector<8x64xf32>
    %65 = arith.addf %62, %64 : vector<8x64xf32>
    %66 = arith.negf %65 : vector<8x64xf32>
    %67 = math.exp %66 : vector<8x64xf32>
    %cst_33 = arith.constant 1.000000e+00 : f32
    %68 = vector.broadcast %cst_33 : f32 to vector<8x64xf32>
    %69 = arith.addf %68, %67 : vector<8x64xf32>
    %70 = arith.divf %68, %69 : vector<8x64xf32>
    %71 = math.tanh %60 : vector<8x64xf32>
    %72 = arith.mulf %70, %71 : vector<8x64xf32>
    %c0_34 = arith.constant 0 : index
    %c0_35 = arith.constant 0 : index
    %73 = vector.load %arg10[%c0_34, %c0_35] : memref<8x64xf32, #tpu.memory_space<vmem>>, vector<8x64xf32>
    tpu.vector_store %arg10[%c0_34, %c0_35], %72 {strides = array<i32>} : memref<8x64xf32, #tpu.memory_space<vmem>>, vector<8x64xf32>,
    return
  }
}

</mosaic_0001>

<llo_original>
// kernel: v2_forward.1
$region0: #{v2_forward.1}
  #allocation0 [shape = 'u32[]', space=smem, size = 0x4, offset = 0x4, fixed_abs, tag = 'smem constant byte address 0x4 - core index']
  #allocation1 [shape = 'u32[144,128]{1,0:T(1,128)}', space=vmem, size = 0x12000, scoped, tag = 'internal scratch']
  %s0 = inlined_call_operand.vmem [shape: f32[8,16], index: 0, kind: input, shape index: {}]
  %s1 = inlined_call_operand.vmem [shape: f32[8,64], index: 1, kind: input, shape index: {}, may-alias: {1,2}]
  %s2 = inlined_call_operand.vmem [shape: f32[8,64], index: 2, kind: input, shape index: {}, may-alias: {1,2}]
  %s3 = inlined_call_operand.vmem [shape: f32[8,32], index: 3, kind: input, shape index: {}]
  %s4 = inlined_call_operand.hbm [shape: f32[16,256], index: 4, kind: input, shape index: {}]
  %s5 = inlined_call_operand.hbm [shape: f32[64,256], index: 5, kind: input, shape index: {}]
  %s6 = inlined_call_operand.hbm [shape: f32[64,256], index: 6, kind: input, shape index: {}]
  %s7 = inlined_call_operand.hbm [shape: f32[32,192], index: 7, kind: input, shape index: {}]
  %s8 = inlined_call_operand.hbm [shape: f32[64,128], index: 8, kind: input, shape index: {}]
  %s9 = inlined_call_operand.vmem [shape: f32[1,320], index: 9, kind: input, shape index: {}]
  %s10 = inlined_call_operand.vmem [shape: f32[8,64], index: 10, kind: output, shape index: {}]
  %s11 = sld [smem:[#allocation0]]
  $region70: #{v2_forward.1} parent=0
    _
  %s13 = ssub.s32 1, %s11
  %s14 = scalar_select 0, %s13, %s11
  $region1: #{v2_forward.1} parent=0
    #allocation2 [shape = 'u8[16384]{0}', space=vmem, size = 0x4000, scoped, tag = 'input window, operand 4, single buffered']
    #allocation3 [shape = 's32[1]{0}', space=sflag, size = 0x4, scoped, tag = 'scoped memory for v2_forward.1']
    #allocation4 [shape = 'u8[65536]{0}', space=vmem, size = 0x10000, scoped, tag = 'input window, operand 5, single buffered']
    #allocation5 [shape = 's32[1]{0}', space=sflag, size = 0x4, scoped, tag = 'scoped memory for v2_forward.1']
    #allocation6 [shape = 'u8[65536]{0}', space=vmem, size = 0x10000, scoped, tag = 'input window, operand 6, single buffered']
    #allocation7 [shape = 'u8[32768]{0}', space=vmem, size = 0x8000, scoped, tag = 'input window, operand 7, single buffered']
    #allocation8 [shape = 's32[1]{0}', space=sflag, size = 0x4, scoped, tag = 'scoped memory for v2_forward.1']
    #allocation9 [shape = 'u8[32768]{0}', space=vmem, size = 0x8000, scoped, tag = 'input window, operand 8, single buffered']
    %15 = vsyncpa [#allocation3], 0
    %16 = vsyncpa [#allocation5], 0
    %17 = vsyncpa [#allocation8], 0
    // Predicated region
    $region2: #{v2_forward.1} parent=1 // pred_check
      _
    $region3: #{v2_forward.1} parent=1 // pred_check_branch
      %19 = sbr.rel (0) target = $region5
    $region4: #{v2_forward.1} parent=1 // pred_region
      _
    $region5: #{v2_forward.1} parent=1 // pred_fallthru
      _
    // Predicated region
    $region6: #{v2_forward.1} parent=1 // pred_check
      _
    $region7: #{v2_forward.1} parent=1 // pred_check_branch
      %21 = sbr.rel (0) target = $region9
    $region8: #{v2_forward.1} parent=1 // pred_region
      _
    $region9: #{v2_forward.1} parent=1 // pred_fallthru
      _
    // Predicated region
    $region10: #{v2_forward.1} parent=1 // pred_check
      _
    $region11: #{v2_forward.1} parent=1 // pred_check_branch
      %23 = sbr.rel (0) target = $region13
    $region12: #{v2_forward.1} parent=1 // pred_region
      _
    $region13: #{v2_forward.1} parent=1 // pred_fallthru
      _
    // Predicated region
    $region14: #{v2_forward.1} parent=1 // pred_check
      _
    $region15: #{v2_forward.1} parent=1 // pred_check_branch
      %25 = sbr.rel (0) target = $region17
    $region16: #{v2_forward.1} parent=1 // pred_region
      _
    $region17: #{v2_forward.1} parent=1 // pred_fallthru
      _
    // Predicated region
    $region18: #{v2_forward.1} parent=1 // pred_check
      _
    $region19: #{v2_forward.1} parent=1 // pred_check_branch
      %27 = sbr.rel (0) target = $region21
    $region20: #{v2_forward.1} parent=1 // pred_region
      %s29 = ssub.s32 512, 512
      %30 = vsyncadd [#allocation3], %s29
      %s31 = sshll.u32 [#allocation2], 4
      %s32 = int_to_ptr.vmem [resolvable:$true] %s31
      %37 = dma.hbm_to_vmem [thread:$0]  %s4, 512, %s32, [#allocation3], 256, 256, 16
    $region21: #{v2_forward.1} parent=1 // pred_fallthru
      _
    // Predicated region
    $region22: #{v2_forward.1} parent=1 // pred_check
      _
    $region23: #{v2_forward.1} parent=1 // pred_check_branch
      %39 = sbr.rel (0) target = $region25
    $region24: #{v2_forward.1} parent=1 // pred_region
      %s41 = ssub.s32 2048, 2048
      %42 = vsyncadd [#allocation5], %s41
      %s43 = sshll.u32 [#allocation4], 4
      %s44 = int_to_ptr.vmem [resolvable:$true] %s43
      %49 = dma.hbm_to_vmem [thread:$0]  %s5, 2048, %s44, [#allocation5], 256, 256, 16
    $region25: #{v2_forward.1} parent=1 // pred_fallthru
      _
    // Predicated region
    $region26: #{v2_forward.1} parent=1 // pred_check
      _
    $region27: #{v2_forward.1} parent=1 // pred_check_branch
      %51 = sbr.rel (0) target = $region29
    $region28: #{v2_forward.1} parent=1 // pred_region
      %s53 = ssub.s32 2048, 2048
      %54 = vsyncadd [#allocation5], %s53
      %s55 = sshll.u32 [#allocation6], 4
      %s56 = int_to_ptr.vmem [resolvable:$true] %s55
      %61 = dma.hbm_to_vmem [thread:$0]  %s6, 2048, %s56, [#allocation5], 256, 256, 16
    $region29: #{v2_forward.1} parent=1 // pred_fallthru
      _
    // Predicated region
    $region30: #{v2_forward.1} parent=1 // pred_check
      _
    $region31: #{v2_forward.1} parent=1 // pred_check_branch
      %63 = sbr.rel (0) target = $region33
    $region32: #{v2_forward.1} parent=1 // pred_region
      %s65 = ssub.s32 1024, 1024
      %66 = vsyncadd [#allocation8], %s65
      %s67 = sshll.u32 [#allocation7], 4
      %s68 = int_to_ptr.vmem [resolvable:$true] %s67
      %73 = dma.hbm_to_vmem [thread:$0]  %s7, 1024, %s68, [#allocation8], 256, 256, 16
    $region33: #{v2_forward.1} parent=1 // pred_fallthru
      _
    // Predicated region
    $region34: #{v2_forward.1} parent=1 // pred_check
      _
    $region35: #{v2_forward.1} parent=1 // pred_check_branch
      %75 = sbr.rel (0) target = $region37
    $region36: #{v2_forward.1} parent=1 // pred_region
      %s77 = ssub.s32 1024, 1024
      %78 = vsyncadd [#allocation8], %s77
      %s79 = sshll.u32 [#allocation9], 4
      %s80 = int_to_ptr.vmem [resolvable:$true] %s79
      %85 = dma.hbm_to_vmem [thread:$0]  %s8, 1024, %s80, [#allocation8], 128, 128, 8
    $region37: #{v2_forward.1} parent=1 // pred_fallthru
      _
    // Predicated region
    $region38: #{v2_forward.1} parent=1 // pred_check
      _
    $region39: #{v2_forward.1} parent=1 // pred_check_branch
      %87 = sbr.rel (0) target = $region41
    $region40: #{v2_forward.1} parent=1 // pred_region
      _
    $region41: #{v2_forward.1} parent=1 // pred_fallthru
      _
    // Predicated region
    $region42: #{v2_forward.1} parent=1 // pred_check
      _
    $region43: #{v2_forward.1} parent=1 // pred_check_branch
      %89 = sbr.rel (0) target = $region45
    $region44: #{v2_forward.1} parent=1 // pred_region
      %90 = dma.done [#allocation3], 512
    $region45: #{v2_forward.1} parent=1 // pred_fallthru
      _
    // Predicated region
    $region46: #{v2_forward.1} parent=1 // pred_check
      _
    $region47: #{v2_forward.1} parent=1 // pred_check_branch
      %92 = sbr.rel (0) target = $region49
    $region48: #{v2_forward.1} parent=1 // pred_region
      %93 = dma.done [#allocation5], 2048
    $region49: #{v2_forward.1} parent=1 // pred_fallthru
      _
    // Predicated region
    $region50: #{v2_forward.1} parent=1 // pred_check
      _
    $region51: #{v2_forward.1} parent=1 // pred_check_branch
      %95 = sbr.rel (0) target = $region53
    $region52: #{v2_forward.1} parent=1 // pred_region
      %96 = dma.done [#allocation5], 2048
    $region53: #{v2_forward.1} parent=1 // pred_fallthru
      _
    // Predicated region
    $region54: #{v2_forward.1} parent=1 // pred_check
      _
    $region55: #{v2_forward.1} parent=1 // pred_check_branch
      %98 = sbr.rel (0) target = $region57
    $region56: #{v2_forward.1} parent=1 // pred_region
      %99 = dma.done [#allocation8], 1024
    $region57: #{v2_forward.1} parent=1 // pred_fallthru
      _
    // Predicated region
    $region58: #{v2_forward.1} parent=1 // pred_check
      _
    $region59: #{v2_forward.1} parent=1 // pred_check_branch
      %101 = sbr.rel (0) target = $region61
    $region60: #{v2_forward.1} parent=1 // pred_region
      %102 = dma.done [#allocation8], 1024
    $region61: #{v2_forward.1} parent=1 // pred_fallthru
      _
    %v103 = vld [vmem:[%s1] sm:$0xff]
    %v104 = vld [vmem:[%s2] sm:$0xff]
    %v105 = vld [vmem:[%s0] sm:$0xff]
    %v106 = vld [vmem:[#allocation2] sm:$0xff]
    %v107 = vld [vmem:[#allocation2 + $0x8] sm:$0xff]
    %v108 = vld [vmem:[#allocation2 + $0x10] sm:$0xff]
    %v109 = vld [vmem:[#allocation2 + $0x18] sm:$0xff]
    %vm110 = vcmask 130048
    %v112 = vsel %vm110, %v105, 0
    %114 = vmatprep.subr.mxu0 %v107
    %115 = vmatpush1.msra.mxu0 %v106
    %116 = vmatprep.subr.mxu0 %v109
    %117 = vmatpush1.msra.mxu0 %v108
    %118 = vmatprep.subr.mxu0 0.0
    %119 = vmatpush1.msra.mxu0 0.0
    %120 = vmatprep.subr.mxu0 0.0
    %121 = vmatpush1.msra.mxu0 0.0
    %122 = vmatprep.subr.mxu0 0.0
    %123 = vmatpush1.msra.mxu0 0.0
    %124 = vmatprep.subr.mxu0 0.0
    %125 = vmatpush1.msra.mxu0 0.0
    %126 = vmatprep.subr.mxu0 0.0
    %127 = vmatpush1.msra.mxu0 0.0
    %128 = vmatprep.subr.mxu0 0.0
    %129 = vmatpush1.msra.mxu0 0.0
    %130 = vmatprep.subr.mxu0 0.0
    %131 = vmatpush1.msra.mxu0 0.0
    %132 = vmatprep.subr.mxu0 0.0
    %133 = vmatpush1.msra.mxu0 0.0
    %134 = vmatprep.subr.mxu0 0.0
    %135 = vmatpush1.msra.mxu0 0.0
    %136 = vmatprep.subr.mxu0 0.0
    %137 = vmatpush1.msra.mxu0 0.0
    %138 = vmatprep.subr.mxu0 0.0
    %139 = vmatpush1.msra.mxu0 0.0
    %140 = vmatprep.subr.mxu0 0.0
    %141 = vmatpush1.msra.mxu0 0.0
    %142 = vmatprep.subr.mxu0 0.0
    %143 = vmatpush1.msra.mxu0 0.0
    %144 = vmatprep.subr.mxu0 0.0
    %145 = vmatpush1.msra.mxu0 0.0
    %146 = vmatprep.subr.mxu0 0.0
    %147 = vmatpush1.msra.mxu0 0.0
    %148 = vmatprep.subr.mxu0 0.0
    %149 = vmatpush1.msra.mxu0 0.0
    %150 = vmatprep.subr.mxu0 0.0
    %151 = vmatpush1.msra.mxu0 0.0
    %152 = vmatprep.subr.mxu0 0.0
    %153 = vmatpush1.msra.mxu0 0.0
    %154 = vmatprep.subr.mxu0 0.0
    %155 = vmatpush1.msra.mxu0 0.0
    %156 = vmatprep.subr.mxu0 0.0
    %157 = vmatpush1.msra.mxu0 0.0
    %158 = vmatprep.subr.mxu0 0.0
    %159 = vmatpush1.msra.mxu0 0.0
    %160 = vmatprep.subr.mxu0 0.0
    %161 = vmatpush1.msra.mxu0 0.0
    %162 = vmatprep.subr.mxu0 0.0
    %163 = vmatpush1.msra.mxu0 0.0
    %164 = vmatprep.subr.mxu0 0.0
    %165 = vmatpush1.msra.mxu0 0.0
    %166 = vmatprep.subr.mxu0 0.0
    %167 = vmatpush1.msra.mxu0 0.0
    %168 = vmatprep.subr.mxu0 0.0
    %169 = vmatpush1.msra.mxu0 0.0
    %170 = vmatprep.subr.mxu0 0.0
    %171 = vmatpush1.msra.mxu0 0.0
    %172 = vmatprep.subr.mxu0 0.0
    %173 = vmatpush1.msra.mxu0 0.0
    %174 = vmatprep.subr.mxu0 0.0
    %175 = vmatpush1.msra.mxu0 0.0
    %176 = vmatprep.subr.mxu0 0.0
    %177 = vmatpush1.msra.mxu0 0.0
    %178 = vmatprep.mubr.f32.mxu0 0.0
    %179 = vmatmul.mubr.f32.gmra.mrb[0].mxu0 %v112
    %v180 = vpop.f32.mrb[0].mxu0
    %v181 = vadd.f32 0.0, %v180
    %v182 = vpop.f32.mrb[0].mxu0
    %v183 = vadd.f32 0.0, %v182
    %184 = vdwg.mxu0
    %v185 = vld [vmem:[#allocation4] sm:$0xff]
    %v186 = vld [vmem:[#allocation4 + $0x8] sm:$0xff]
    %v187 = vld [vmem:[#allocation4 + $0x10] sm:$0xff]
    %v188 = vld [vmem:[#allocation4 + $0x18] sm:$0xff]
    %v189 = vld [vmem:[#allocation4 + $0x20] sm:$0xff]
    %v190 = vld [vmem:[#allocation4 + $0x28] sm:$0xff]
    %v191 = vld [vmem:[#allocation4 + $0x30] sm:$0xff]
    %v192 = vld [vmem:[#allocation4 + $0x38] sm:$0xff]
    %v193 = vld [vmem:[#allocation4 + $0x40] sm:$0xff]
    %v194 = vld [vmem:[#allocation4 + $0x48] sm:$0xff]
    %v195 = vld [vmem:[#allocation4 + $0x50] sm:$0xff]
    %v196 = vld [vmem:[#allocation4 + $0x58] sm:$0xff]
    %v197 = vld [vmem:[#allocation4 + $0x60] sm:$0xff]
    %v198 = vld [vmem:[#allocation4 + $0x68] sm:$0xff]
    %v199 = vld [vmem:[#allocation4 + $0x70] sm:$0xff]
    %v200 = vld [vmem:[#allocation4 + $0x78] sm:$0xff]
    %vm201 = vcmask 523264
    %v203 = vsel %vm201, %v103, 0
    %205 = vmatprep.subr.mxu0 %v186
    %206 = vmatpush1.msra.mxu0 %v185
    %207 = vmatprep.subr.mxu0 %v188
    %208 = vmatpush1.msra.mxu0 %v187
    %209 = vmatprep.subr.mxu0 %v190
    %210 = vmatpush1.msra.mxu0 %v189
    %211 = vmatprep.subr.mxu0 %v192
    %212 = vmatpush1.msra.mxu0 %v191
    %213 = vmatprep.subr.mxu0 %v194
    %214 = vmatpush1.msra.mxu0 %v193
    %215 = vmatprep.subr.mxu0 %v196
    %216 = vmatpush1.msra.mxu0 %v195
    %217 = vmatprep.subr.mxu0 %v198
    %218 = vmatpush1.msra.mxu0 %v197
    %219 = vmatprep.subr.mxu0 %v200
    %220 = vmatpush1.msra.mxu0 %v199
    %221 = vmatprep.subr.mxu0 0.0
    %222 = vmatpush1.msra.mxu0 0.0
    %223 = vmatprep.subr.mxu0 0.0
    %224 = vmatpush1.msra.mxu0 0.0
    %225 = vmatprep.subr.mxu0 0.0
    %226 = vmatpush1.msra.mxu0 0.0
    %227 = vmatprep.subr.mxu0 0.0
    %228 = vmatpush1.msra.mxu0 0.0
    %229 = vmatprep.subr.mxu0 0.0
    %230 = vmatpush1.msra.mxu0 0.0
    %231 = vmatprep.subr.mxu0 0.0
    %232 = vmatpush1.msra.mxu0 0.0
    %233 = vmatprep.subr.mxu0 0.0
    %234 = vmatpush1.msra.mxu0 0.0
    %235 = vmatprep.subr.mxu0 0.0
    %236 = vmatpush1.msra.mxu0 0.0
    %237 = vmatprep.subr.mxu0 0.0
    %238 = vmatpush1.msra.mxu0 0.0
    %239 = vmatprep.subr.mxu0 0.0
    %240 = vmatpush1.msra.mxu0 0.0
    %241 = vmatprep.subr.mxu0 0.0
    %242 = vmatpush1.msra.mxu0 0.0
    %243 = vmatprep.subr.mxu0 0.0
    %244 = vmatpush1.msra.mxu0 0.0
    %245 = vmatprep.subr.mxu0 0.0
    %246 = vmatpush1.msra.mxu0 0.0
    %247 = vmatprep.subr.mxu0 0.0
    %248 = vmatpush1.msra.mxu0 0.0
    %249 = vmatprep.subr.mxu0 0.0
    %250 = vmatpush1.msra.mxu0 0.0
    %251 = vmatprep.subr.mxu0 0.0
    %252 = vmatpush1.msra.mxu0 0.0
    %253 = vmatprep.subr.mxu0 0.0
    %254 = vmatpush1.msra.mxu0 0.0
    %255 = vmatprep.subr.mxu0 0.0
    %256 = vmatpush1.msra.mxu0 0.0
    %257 = vmatprep.subr.mxu0 0.0
    %258 = vmatpush1.msra.mxu0 0.0
    %259 = vmatprep.subr.mxu0 0.0
    %260 = vmatpush1.msra.mxu0 0.0
    %261 = vmatprep.subr.mxu0 0.0
    %262 = vmatpush1.msra.mxu0 0.0
    %263 = vmatprep.subr.mxu0 0.0
    %264 = vmatpush1.msra.mxu0 0.0
    %265 = vmatprep.subr.mxu0 0.0
    %266 = vmatpush1.msra.mxu0 0.0
    %267 = vmatprep.subr.mxu0 0.0
    %268 = vmatpush1.msra.mxu0 0.0
    %269 = vmatprep.mubr.f32.mxu0 0.0
    %270 = vmatmul.mubr.f32.gmra.mrb[0].mxu0 %v203
    %v271 = vpop.f32.mrb[0].mxu0
    %v272 = vadd.f32 0.0, %v271
    %v273 = vpop.f32.mrb[0].mxu0
    %v274 = vadd.f32 0.0, %v273
    %275 = vdwg.mxu0
    %v276 = vsub.f32 %v181, %v272
    %v277 = vrcp.pop %v181
    %v278 = vmul.f32 %v276, %v277
    %v279 = vand.u32 2147483647, %v278
    %v280 = vsub.f32 1.0, %v279
    %v281 = vadd.f32 %v181, %v272
    %v282 = vadd.f32 %v183, %v274
    %v283 = vtanh.pop %v281
    %v284 = vxor.u32 %v282, 2147483648
    %v285 = vmul.f32 %v284, 1.442695
    %v286 = vpow.pop %v285
    %v287 = vadd.f32 %v286, 1.0
    %v288 = vrcp.pop %v287
    %v289 = vmul.f32 1.0, %v288
    %v290 = vmul.f32 %v280, %v104
    %292 = vrot.lane.b32.xlu0 %v283, 64
    %v293 = vpop.permute.xlu0 %292
    %v295 = vmul.f32 %v289, %v293
    %v296 = vadd.f32 %v290, %v295
    %v297 = vtanh.pop %v296
    %299 = vrot.lane.b32.xlu0 %v297, 64
    %v300 = vpop.permute.xlu0 %299
    %v302 = vmul.f32 %v289, %v300
    %v303 = vld [vmem:[#allocation6] sm:$0xff]
    %v304 = vld [vmem:[#allocation6 + $0x8] sm:$0xff]
    %v305 = vld [vmem:[#allocation6 + $0x10] sm:$0xff]
    %v306 = vld [vmem:[#allocation6 + $0x18] sm:$0xff]
    %v307 = vld [vmem:[#allocation6 + $0x20] sm:$0xff]
    %v308 = vld [vmem:[#allocation6 + $0x28] sm:$0xff]
    %v309 = vld [vmem:[#allocation6 + $0x30] sm:$0xff]
    %v310 = vld [vmem:[#allocation6 + $0x38] sm:$0xff]
    %v311 = vld [vmem:[#allocation6 + $0x40] sm:$0xff]
    %v312 = vld [vmem:[#allocation6 + $0x48] sm:$0xff]
    %v313 = vld [vmem:[#allocation6 + $0x50] sm:$0xff]
    %v314 = vld [vmem:[#allocation6 + $0x58] sm:$0xff]
    %v315 = vld [vmem:[#allocation6 + $0x60] sm:$0xff]
    %v316 = vld [vmem:[#allocation6 + $0x68] sm:$0xff]
    %v317 = vld [vmem:[#allocation6 + $0x70] sm:$0xff]
    %v318 = vld [vmem:[#allocation6 + $0x78] sm:$0xff]
    %v319 = vld [vmem:[%s3] sm:$0xff]
    %v320 = vld [vmem:[#allocation7] sm:$0xff]
    %v321 = vld [vmem:[#allocation7 + $0x8] sm:$0xff]
    %v322 = vld [vmem:[#allocation7 + $0x10] sm:$0xff]
    %v323 = vld [vmem:[#allocation7 + $0x18] sm:$0xff]
    %v324 = vld [vmem:[#allocation7 + $0x20] sm:$0xff]
    %v325 = vld [vmem:[#allocation7 + $0x28] sm:$0xff]
    %v326 = vld [vmem:[#allocation7 + $0x30] sm:$0xff]
    %v327 = vld [vmem:[#allocation7 + $0x38] sm:$0xff]
    %vm328 = vcmask 261120
    %v330 = vsel %vm328, %v319, 0
    %332 = vmatprep.subr.mxu0 %v321
    %333 = vmatpush1.msra.mxu0 %v320
    %334 = vmatprep.subr.mxu0 %v323
    %335 = vmatpush1.msra.mxu0 %v322
    %336 = vmatprep.subr.mxu0 %v325
    %337 = vmatpush1.msra.mxu0 %v324
    %338 = vmatprep.subr.mxu0 %v327
    %339 = vmatpush1.msra.mxu0 %v326
    %340 = vmatprep.subr.mxu0 0.0
    %341 = vmatpush1.msra.mxu0 0.0
    %342 = vmatprep.subr.mxu0 0.0
    %343 = vmatpush1.msra.mxu0 0.0
    %344 = vmatprep.subr.mxu0 0.0
    %345 = vmatpush1.msra.mxu0 0.0
    %346 = vmatprep.subr.mxu0 0.0
    %347 = vmatpush1.msra.mxu0 0.0
    %348 = vmatprep.subr.mxu0 0.0
    %349 = vmatpush1.msra.mxu0 0.0
    %350 = vmatprep.subr.mxu0 0.0
    %351 = vmatpush1.msra.mxu0 0.0
    %352 = vmatprep.subr.mxu0 0.0
    %353 = vmatpush1.msra.mxu0 0.0
    %354 = vmatprep.subr.mxu0 0.0
    %355 = vmatpush1.msra.mxu0 0.0
    %356 = vmatprep.subr.mxu0 0.0
    %357 = vmatpush1.msra.mxu0 0.0
    %358 = vmatprep.subr.mxu0 0.0
    %359 = vmatpush1.msra.mxu0 0.0
    %360 = vmatprep.subr.mxu0 0.0
    %361 = vmatpush1.msra.mxu0 0.0
    %362 = vmatprep.subr.mxu0 0.0
    %363 = vmatpush1.msra.mxu0 0.0
    %364 = vmatprep.subr.mxu0 0.0
    %365 = vmatpush1.msra.mxu0 0.0
    %366 = vmatprep.subr.mxu0 0.0
    %367 = vmatpush1.msra.mxu0 0.0
    %368 = vmatprep.subr.mxu0 0.0
    %369 = vmatpush1.msra.mxu0 0.0
    %370 = vmatprep.subr.mxu0 0.0
    %371 = vmatpush1.msra.mxu0 0.0
    %372 = vmatprep.subr.mxu0 0.0
    %373 = vmatpush1.msra.mxu0 0.0
    %374 = vmatprep.subr.mxu0 0.0
    %375 = vmatpush1.msra.mxu0 0.0
    %376 = vmatprep.subr.mxu0 0.0
    %377 = vmatpush1.msra.mxu0 0.0
    %378 = vmatprep.subr.mxu0 0.0
    %379 = vmatpush1.msra.mxu0 0.0
    %380 = vmatprep.subr.mxu0 0.0
    %381 = vmatpush1.msra.mxu0 0.0
    %382 = vmatprep.subr.mxu0 0.0
    %383 = vmatpush1.msra.mxu0 0.0
    %384 = vmatprep.subr.mxu0 0.0
    %385 = vmatpush1.msra.mxu0 0.0
    %386 = vmatprep.subr.mxu0 0.0
    %387 = vmatpush1.msra.mxu0 0.0
    %388 = vmatprep.subr.mxu0 0.0
    %389 = vmatpush1.msra.mxu0 0.0
    %390 = vmatprep.subr.mxu0 0.0
    %391 = vmatpush1.msra.mxu0 0.0
    %392 = vmatprep.subr.mxu0 0.0
    %393 = vmatpush1.msra.mxu0 0.0
    %394 = vmatprep.subr.mxu0 0.0
    %395 = vmatpush1.msra.mxu0 0.0
    %396 = vmatprep.mubr.f32.mxu0 0.0
    %397 = vmatmul.mubr.f32.gmra.mrb[0].mxu0 %v330
    %v398 = vpop.f32.mrb[0].mxu0
    %v399 = vadd.f32 0.0, %v398
    %v400 = vpop.f32.mrb[0].mxu0
    %v401 = vadd.f32 0.0, %v400
    %402 = vdwg.mxu0
    %404 = vrot.lane.b32.xlu0 %v302, 64
    %v405 = vpop.permute.xlu0 %404
    %v406 = vsel %vm201, %v405, 0
    %408 = vmatprep.subr.mxu0 %v304
    %409 = vmatpush1.msra.mxu0 %v303
    %410 = vmatprep.subr.mxu0 %v306
    %411 = vmatpush1.msra.mxu0 %v305
    %412 = vmatprep.subr.mxu0 %v308
    %413 = vmatpush1.msra.mxu0 %v307
    %414 = vmatprep.subr.mxu0 %v310
    %415 = vmatpush1.msra.mxu0 %v309
    %416 = vmatprep.subr.mxu0 %v312
    %417 = vmatpush1.msra.mxu0 %v311
    %418 = vmatprep.subr.mxu0 %v314
    %419 = vmatpush1.msra.mxu0 %v313
    %420 = vmatprep.subr.mxu0 %v316
    %421 = vmatpush1.msra.mxu0 %v315
    %422 = vmatprep.subr.mxu0 %v318
    %423 = vmatpush1.msra.mxu0 %v317
    %424 = vmatprep.subr.mxu0 0.0
    %425 = vmatpush1.msra.mxu0 0.0
    %426 = vmatprep.subr.mxu0 0.0
    %427 = vmatpush1.msra.mxu0 0.0
    %428 = vmatprep.subr.mxu0 0.0
    %429 = vmatpush1.msra.mxu0 0.0
    %430 = vmatprep.subr.mxu0 0.0
    %431 = vmatpush1.msra.mxu0 0.0
    %432 = vmatprep.subr.mxu0 0.0
    %433 = vmatpush1.msra.mxu0 0.0
    %434 = vmatprep.subr.mxu0 0.0
    %435 = vmatpush1.msra.mxu0 0.0
    %436 = vmatprep.subr.mxu0 0.0
    %437 = vmatpush1.msra.mxu0 0.0
    %438 = vmatprep.subr.mxu0 0.0
    %439 = vmatpush1.msra.mxu0 0.0
    %440 = vmatprep.subr.mxu0 0.0
    %441 = vmatpush1.msra.mxu0 0.0
    %442 = vmatprep.subr.mxu0 0.0
    %443 = vmatpush1.msra.mxu0 0.0
    %444 = vmatprep.subr.mxu0 0.0
    %445 = vmatpush1.msra.mxu0 0.0
    %446 = vmatprep.subr.mxu0 0.0
    %447 = vmatpush1.msra.mxu0 0.0
    %448 = vmatprep.subr.mxu0 0.0
    %449 = vmatpush1.msra.mxu0 0.0
    %450 = vmatprep.subr.mxu0 0.0
    %451 = vmatpush1.msra.mxu0 0.0
    %452 = vmatprep.subr.mxu0 0.0
    %453 = vmatpush1.msra.mxu0 0.0
    %454 = vmatprep.subr.mxu0 0.0
    %455 = vmatpush1.msra.mxu0 0.0
    %456 = vmatprep.subr.mxu0 0.0
    %457 = vmatpush1.msra.mxu0 0.0
    %458 = vmatprep.subr.mxu0 0.0
    %459 = vmatpush1.msra.mxu0 0.0
    %460 = vmatprep.subr.mxu0 0.0
    %461 = vmatpush1.msra.mxu0 0.0
    %462 = vmatprep.subr.mxu0 0.0
    %463 = vmatpush1.msra.mxu0 0.0
    %464 = vmatprep.subr.mxu0 0.0
    %465 = vmatpush1.msra.mxu0 0.0
    %466 = vmatprep.subr.mxu0 0.0
    %467 = vmatpush1.msra.mxu0 0.0
    %468 = vmatprep.subr.mxu0 0.0
    %469 = vmatpush1.msra.mxu0 0.0
    %470 = vmatprep.subr.mxu0 0.0
    %471 = vmatpush1.msra.mxu0 0.0
    %472 = vmatprep.mubr.f32.mxu0 0.0
    %473 = vmatmul.mubr.f32.gmra.mrb[0].mxu0 %v406
    %v474 = vpop.f32.mrb[0].mxu0
    %v475 = vadd.f32 %v399, %v474
    %v476 = vpop.f32.mrb[0].mxu0
    %v477 = vadd.f32 %v401, %v476
    %478 = vdwg.mxu0
    %v479 = vld [vmem:[%s9] sm:$0x3]
    %v481 = vlaneseq
    %v482 = vshrl.u32 %v481, 7
    %v483 = vsub.s32 0, %v482
    %v484 = vrot.slane %v479, %v483
    %v485 = vlaneseq
    %v486 = vshrl.u32 %v485, 7
    %v487 = vsub.s32 1, %v486
    %v488 = vrot.slane %v479, %v487
    %v491 = vadd.f32 %v475, %v484
    %v492 = vadd.f32 %v477, %v488
    %v493 = vxor.u32 %v491, 2147483648
    %v494 = vmul.f32 %v493, 1.442695
    %v495 = vpow.pop %v494
    %v496 = vadd.f32 %v495, 1.0
    %v497 = vrcp.pop %v496
    %v498 = vmul.f32 1.0, %v497
    %v499 = vtanh.pop %v492
    %508 = vrot.lane.b32.xlu0 %v304, 64
    %v509 = vpop.permute.xlu0 %508
    %510 = vrot.lane.b32.xlu0 %v306, 64
    %v511 = vpop.permute.xlu0 %510
    %512 = vrot.lane.b32.xlu0 %v308, 64
    %v513 = vpop.permute.xlu0 %512
    %514 = vrot.lane.b32.xlu0 %v310, 64
    %v515 = vpop.permute.xlu0 %514
    %516 = vrot.lane.b32.xlu0 %v312, 64
    %v517 = vpop.permute.xlu0 %516
    %518 = vrot.lane.b32.xlu0 %v314, 64
    %v519 = vpop.permute.xlu0 %518
    %520 = vrot.lane.b32.xlu0 %v316, 64
    %v521 = vpop.permute.xlu0 %520
    %522 = vrot.lane.b32.xlu0 %v318, 64
    %v523 = vpop.permute.xlu0 %522
    %v533 = vsel %vm201, %v296, 0
    %535 = vmatprep.subr.mxu0 0.0
    %536 = vmatpush1.msra.mxu0 %v509
    %537 = vmatprep.subr.mxu0 0.0
    %538 = vmatpush1.msra.mxu0 %v511
    %539 = vmatprep.subr.mxu0 0.0
    %540 = vmatpush1.msra.mxu0 %v513
    %541 = vmatprep.subr.mxu0 0.0
    %542 = vmatpush1.msra.mxu0 %v515
    %543 = vmatprep.subr.mxu0 0.0
    %544 = vmatpush1.msra.mxu0 %v517
    %545 = vmatprep.subr.mxu0 0.0
    %546 = vmatpush1.msra.mxu0 %v519
    %547 = vmatprep.subr.mxu0 0.0
    %548 = vmatpush1.msra.mxu0 %v521
    %549 = vmatprep.subr.mxu0 0.0
    %550 = vmatpush1.msra.mxu0 %v523
    %551 = vmatprep.subr.mxu0 0.0
    %552 = vmatpush1.msra.mxu0 0.0
    %553 = vmatprep.subr.mxu0 0.0
    %554 = vmatpush1.msra.mxu0 0.0
    %555 = vmatprep.subr.mxu0 0.0
    %556 = vmatpush1.msra.mxu0 0.0
    %557 = vmatprep.subr.mxu0 0.0
    %558 = vmatpush1.msra.mxu0 0.0
    %559 = vmatprep.subr.mxu0 0.0
    %560 = vmatpush1.msra.mxu0 0.0
    %561 = vmatprep.subr.mxu0 0.0
    %562 = vmatpush1.msra.mxu0 0.0
    %563 = vmatprep.subr.mxu0 0.0
    %564 = vmatpush1.msra.mxu0 0.0
    %565 = vmatprep.subr.mxu0 0.0
    %566 = vmatpush1.msra.mxu0 0.0
    %567 = vmatprep.subr.mxu0 0.0
    %568 = vmatpush1.msra.mxu0 0.0
    %569 = vmatprep.subr.mxu0 0.0
    %570 = vmatpush1.msra.mxu0 0.0
    %571 = vmatprep.subr.mxu0 0.0
    %572 = vmatpush1.msra.mxu0 0.0
    %573 = vmatprep.subr.mxu0 0.0
    %574 = vmatpush1.msra.mxu0 0.0
    %575 = vmatprep.subr.mxu0 0.0
    %576 = vmatpush1.msra.mxu0 0.0
    %577 = vmatprep.subr.mxu0 0.0
    %578 = vmatpush1.msra.mxu0 0.0
    %579 = vmatprep.subr.mxu0 0.0
    %580 = vmatpush1.msra.mxu0 0.0
    %581 = vmatprep.subr.mxu0 0.0
    %582 = vmatpush1.msra.mxu0 0.0
    %583 = vmatprep.subr.mxu0 0.0
    %584 = vmatpush1.msra.mxu0 0.0
    %585 = vmatprep.subr.mxu0 0.0
    %586 = vmatpush1.msra.mxu0 0.0
    %587 = vmatprep.subr.mxu0 0.0
    %588 = vmatpush1.msra.mxu0 0.0
    %589 = vmatprep.subr.mxu0 0.0
    %590 = vmatpush1.msra.mxu0 0.0
    %591 = vmatprep.subr.mxu0 0.0
    %592 = vmatpush1.msra.mxu0 0.0
    %593 = vmatprep.subr.mxu0 0.0
    %594 = vmatpush1.msra.mxu0 0.0
    %595 = vmatprep.subr.mxu0 0.0
    %596 = vmatpush1.msra.mxu0 0.0
    %597 = vmatprep.subr.mxu0 0.0
    %598 = vmatpush1.msra.mxu0 0.0
    %599 = vmatprep.mubr.f32.mxu0 0.0
    %600 = vmatmul.mubr.f32.gmra.mrb[0].mxu0 %v533
    %v601 = vpop.f32.mrb[0].mxu0
    %v602 = vadd.f32 0.0, %v601
    %v603 = vpop.f32.mrb[0].mxu0
    %604 = vdwg.mxu0
    %v605 = vmul.f32 %v498, %v602
    %607 = vrot.lane.b32.xlu0 %v499, 64
    %v608 = vpop.permute.xlu0 %607
    %v610 = vmul.f32 %v498, %v608
    %612 = vrot.lane.b32.xlu0 %v605, 64
    %v613 = vpop.permute.xlu0 %612
    %v615 = vadd.f32 %v610, %v613
    %v616 = vld [vmem:[#allocation9] sm:$0xff]
    %v617 = vld [vmem:[#allocation9 + $0x8] sm:$0xff]
    %v618 = vld [vmem:[#allocation9 + $0x10] sm:$0xff]
    %v619 = vld [vmem:[#allocation9 + $0x18] sm:$0xff]
    %v620 = vld [vmem:[#allocation9 + $0x20] sm:$0xff]
    %v621 = vld [vmem:[#allocation9 + $0x28] sm:$0xff]
    %v622 = vld [vmem:[#allocation9 + $0x30] sm:$0xff]
    %v623 = vld [vmem:[#allocation9 + $0x38] sm:$0xff]
    %v624 = vld [vmem:[%s9 + $0x1] sm:$0x1]
    %v626 = vlaneseq
    %v627 = vshrl.u32 %v626, 7
    %v628 = vsub.s32 0, %v627
    %v629 = vrot.slane %v624, %v628
    %630 = vrot.lane.b32.xlu0 %v629, 64
    %v631 = vpop.permute.xlu0 %630
    %v633 = vsel %vm201, %v605, 0
    %635 = vmatprep.subr.mxu0 0.0
    %636 = vmatpush1.msra.mxu0 %v616
    %637 = vmatprep.subr.mxu0 0.0
    %638 = vmatpush1.msra.mxu0 %v617
    %639 = vmatprep.subr.mxu0 0.0
    %640 = vmatpush1.msra.mxu0 %v618
    %641 = vmatprep.subr.mxu0 0.0
    %642 = vmatpush1.msra.mxu0 %v619
    %643 = vmatprep.subr.mxu0 0.0
    %644 = vmatpush1.msra.mxu0 %v620
    %645 = vmatprep.subr.mxu0 0.0
    %646 = vmatpush1.msra.mxu0 %v621
    %647 = vmatprep.subr.mxu0 0.0
    %648 = vmatpush1.msra.mxu0 %v622
    %649 = vmatprep.subr.mxu0 0.0
    %650 = vmatpush1.msra.mxu0 %v623
    %651 = vmatprep.subr.mxu0 0.0
    %652 = vmatpush1.msra.mxu0 0.0
    %653 = vmatprep.subr.mxu0 0.0
    %654 = vmatpush1.msra.mxu0 0.0
    %655 = vmatprep.subr.mxu0 0.0
    %656 = vmatpush1.msra.mxu0 0.0
    %657 = vmatprep.subr.mxu0 0.0
    %658 = vmatpush1.msra.mxu0 0.0
    %659 = vmatprep.subr.mxu0 0.0
    %660 = vmatpush1.msra.mxu0 0.0
    %661 = vmatprep.subr.mxu0 0.0
    %662 = vmatpush1.msra.mxu0 0.0
    %663 = vmatprep.subr.mxu0 0.0
    %664 = vmatpush1.msra.mxu0 0.0
    %665 = vmatprep.subr.mxu0 0.0
    %666 = vmatpush1.msra.mxu0 0.0
    %667 = vmatprep.subr.mxu0 0.0
    %668 = vmatpush1.msra.mxu0 0.0
    %669 = vmatprep.subr.mxu0 0.0
    %670 = vmatpush1.msra.mxu0 0.0
    %671 = vmatprep.subr.mxu0 0.0
    %672 = vmatpush1.msra.mxu0 0.0
    %673 = vmatprep.subr.mxu0 0.0
    %674 = vmatpush1.msra.mxu0 0.0
    %675 = vmatprep.subr.mxu0 0.0
    %676 = vmatpush1.msra.mxu0 0.0
    %677 = vmatprep.subr.mxu0 0.0
    %678 = vmatpush1.msra.mxu0 0.0
    %679 = vmatprep.subr.mxu0 0.0
    %680 = vmatpush1.msra.mxu0 0.0
    %681 = vmatprep.subr.mxu0 0.0
    %682 = vmatpush1.msra.mxu0 0.0
    %683 = vmatprep.subr.mxu0 0.0
    %684 = vmatpush1.msra.mxu0 0.0
    %685 = vmatprep.subr.mxu0 0.0
    %686 = vmatpush1.msra.mxu0 0.0
    %687 = vmatprep.subr.mxu0 0.0
    %688 = vmatpush1.msra.mxu0 0.0
    %689 = vmatprep.subr.mxu0 0.0
    %690 = vmatpush1.msra.mxu0 0.0
    %691 = vmatprep.subr.mxu0 0.0
    %692 = vmatpush1.msra.mxu0 0.0
    %693 = vmatprep.subr.mxu0 0.0
    %694 = vmatpush1.msra.mxu0 0.0
    %695 = vmatprep.subr.mxu0 0.0
    %696 = vmatpush1.msra.mxu0 0.0
    %697 = vmatprep.subr.mxu0 0.0
    %698 = vmatpush1.msra.mxu0 0.0
    %699 = vmatprep.mubr.f32.mxu0 0.0
    %700 = vmatmul.mubr.f32.gmra.mrb[0].mxu0 %v633
    %v701 = vpop.f32.mrb[0].mxu0
    %v702 = vadd.f32 %v631, %v701
    %v703 = vpop.f32.mrb[0].mxu0
    %704 = vdwg.mxu0
    %v705 = vld [vmem:[%s9 + $0x2] sm:$0x1]
    %v707 = vlaneseq
    %v708 = vshrl.u32 %v707, 7
    %v709 = vsub.s32 0, %v708
    %v710 = vrot.slane %v705, %v709
    %713 = vrot.lane.b32.xlu0 %v615, 64
    %v714 = vpop.permute.xlu0 %713
    %723 = vrot.lane.b32.xlu0 %v616, 64
    %v724 = vpop.permute.xlu0 %723
    %725 = vrot.lane.b32.xlu0 %v617, 64
    %v726 = vpop.permute.xlu0 %725
    %727 = vrot.lane.b32.xlu0 %v618, 64
    %v728 = vpop.permute.xlu0 %727
    %729 = vrot.lane.b32.xlu0 %v619, 64
    %v730 = vpop.permute.xlu0 %729
    %731 = vrot.lane.b32.xlu0 %v620, 64
    %v732 = vpop.permute.xlu0 %731
    %733 = vrot.lane.b32.xlu0 %v621, 64
    %v734 = vpop.permute.xlu0 %733
    %735 = vrot.lane.b32.xlu0 %v622, 64
    %v736 = vpop.permute.xlu0 %735
    %737 = vrot.lane.b32.xlu0 %v623, 64
    %v738 = vpop.permute.xlu0 %737
    %v747 = vsel %vm201, %v714, 0
    %749 = vmatprep.subr.mxu0 0.0
    %750 = vmatpush1.msra.mxu0 %v724
    %751 = vmatprep.subr.mxu0 0.0
    %752 = vmatpush1.msra.mxu0 %v726
    %753 = vmatprep.subr.mxu0 0.0
    %754 = vmatpush1.msra.mxu0 %v728
    %755 = vmatprep.subr.mxu0 0.0
    %756 = vmatpush1.msra.mxu0 %v730
    %757 = vmatprep.subr.mxu0 0.0
    %758 = vmatpush1.msra.mxu0 %v732
    %759 = vmatprep.subr.mxu0 0.0
    %760 = vmatpush1.msra.mxu0 %v734
    %761 = vmatprep.subr.mxu0 0.0
    %762 = vmatpush1.msra.mxu0 %v736
    %763 = vmatprep.subr.mxu0 0.0
    %764 = vmatpush1.msra.mxu0 %v738
    %765 = vmatprep.subr.mxu0 0.0
    %766 = vmatpush1.msra.mxu0 0.0
    %767 = vmatprep.subr.mxu0 0.0
    %768 = vmatpush1.msra.mxu0 0.0
    %769 = vmatprep.subr.mxu0 0.0
    %770 = vmatpush1.msra.mxu0 0.0
    %771 = vmatprep.subr.mxu0 0.0
    %772 = vmatpush1.msra.mxu0 0.0
    %773 = vmatprep.subr.mxu0 0.0
    %774 = vmatpush1.msra.mxu0 0.0
    %775 = vmatprep.subr.mxu0 0.0
    %776 = vmatpush1.msra.mxu0 0.0
    %777 = vmatprep.subr.mxu0 0.0
    %778 = vmatpush1.msra.mxu0 0.0
    %779 = vmatprep.subr.mxu0 0.0
    %780 = vmatpush1.msra.mxu0 0.0
    %781 = vmatprep.subr.mxu0 0.0
    %782 = vmatpush1.msra.mxu0 0.0
    %783 = vmatprep.subr.mxu0 0.0
    %784 = vmatpush1.msra.mxu0 0.0
    %785 = vmatprep.subr.mxu0 0.0
    %786 = vmatpush1.msra.mxu0 0.0
    %787 = vmatprep.subr.mxu0 0.0
    %788 = vmatpush1.msra.mxu0 0.0
    %789 = vmatprep.subr.mxu0 0.0
    %790 = vmatpush1.msra.mxu0 0.0
    %791 = vmatprep.subr.mxu0 0.0
    %792 = vmatpush1.msra.mxu0 0.0
    %793 = vmatprep.subr.mxu0 0.0
    %794 = vmatpush1.msra.mxu0 0.0
    %795 = vmatprep.subr.mxu0 0.0
    %796 = vmatpush1.msra.mxu0 0.0
    %797 = vmatprep.subr.mxu0 0.0
    %798 = vmatpush1.msra.mxu0 0.0
    %799 = vmatprep.subr.mxu0 0.0
    %800 = vmatpush1.msra.mxu0 0.0
    %801 = vmatprep.subr.mxu0 0.0
    %802 = vmatpush1.msra.mxu0 0.0
    %803 = vmatprep.subr.mxu0 0.0
    %804 = vmatpush1.msra.mxu0 0.0
    %805 = vmatprep.subr.mxu0 0.0
    %806 = vmatpush1.msra.mxu0 0.0
    %807 = vmatprep.subr.mxu0 0.0
    %808 = vmatpush1.msra.mxu0 0.0
    %809 = vmatprep.subr.mxu0 0.0
    %810 = vmatpush1.msra.mxu0 0.0
    %811 = vmatprep.subr.mxu0 0.0
    %812 = vmatpush1.msra.mxu0 0.0
    %813 = vmatprep.mubr.f32.mxu0 0.0
    %814 = vmatmul.mubr.f32.gmra.mrb[0].mxu0 %v747
    %v815 = vpop.f32.mrb[0].mxu0
    %v816 = vadd.f32 %v710, %v815
    %v817 = vpop.f32.mrb[0].mxu0
    %818 = vdwg.mxu0
    %v819 = vxor.u32 %v816, 2147483648
    %v820 = vmul.f32 %v819, 1.442695
    %v821 = vpow.pop %v820
    %v822 = vadd.f32 %v821, 1.0
    %v823 = vrcp.pop %v822
    %v824 = vmul.f32 1.0, %v823
    %v825 = vtanh.pop %v702
    %v826 = vmul.f32 %v824, %v825
    %827 = vst.msk [vmem:[%s10] sm:$0xff] %vm201, %v826
    // Predicated region
    $region62: #{v2_forward.1} parent=1 // pred_check
      _
    $region63: #{v2_forward.1} parent=1 // pred_check_branch
      %829 = sbr.rel (0) target = $region65
    $region64: #{v2_forward.1} parent=1 // pred_region
      _
    $region65: #{v2_forward.1} parent=1 // pred_fallthru
      _
    // Predicated region
    $region66: #{v2_forward.1} parent=1 // pred_check
      _
    $region67: #{v2_forward.1} parent=1 // pred_check_branch
      %831 = sbr.rel (0) target = $region69
    $region68: #{v2_forward.1} parent=1 // pred_region
      _
    $region69: #{v2_forward.1} parent=1 // pred_fallthru
      _
    %832 = vsyncpa [#allocation3], 1
    %833 = vsyncpa [#allocation5], 1
    %834 = vsyncpa [#allocation8], 1

</llo_original>
